<compile_context>
chip_gen: v6e
topology: v6e:2x2x1
jax: 0.10.0
libtpu: 0.0.40
codegen_flags: <defaults>
</compile_context>

<pallas_src>
import functools

import jax
import jax.numpy as jnp
from jax.experimental import pallas as pl
from jax.experimental.pallas import tpu as pltpu

_LANE = 128


def _round_up(x, m):
    return (x + m - 1) // m * m


def _vmem_capacity_bytes():
    try:
        return int(pltpu.get_tpu_info().vmem_capacity_bytes)
    except Exception:
        return 128 << 20   # safe fallback (v5e/v6e physical VMEM)


def _fused_heads_kernel(x_ref, w1_ref, b1_ref, w2_ref, b2_ref, out_ref):
    """One row tile, both heads fused.

    x_ref  : [tm, D]   activation dtype
    w1_ref : [D, 2D]   activation dtype (resident, [w1v | w1c])
    b1_ref : [1, 2D]   f32
    w2_ref : [2D, 4]   f32 (block-diagonal: [[w2v, 0], [0, w2c]])
    b2_ref : [1, 4]    f32
    out_ref: [tm, 4]   cols 0:2 = vel, cols 2:4 = cov
    """
    h1 = jnp.dot(x_ref[...], w1_ref[...], preferred_element_type=jnp.float32)
    h1 = jnp.maximum(h1 + b1_ref[...], 0.0)              # f32 bias-add / ReLU
    out = jnp.dot(h1, w2_ref[...], preferred_element_type=jnp.float32)
    out = out + b2_ref[...]
    out_ref[...] = out.astype(out_ref.dtype)


@functools.partial(jax.jit, static_argnames=("tm",))
def output_heads(h, params, tm=None):
    """h: [B, T, D] -> (vel [B, T, 2], cov [B, T, 2])."""
    B, T, D = h.shape
    N = B * T
    x = h.reshape(N, D)
    dtype = h.dtype
    itemsize = jnp.dtype(dtype).itemsize
    pack = max(8, 32 // itemsize)      # sublane pack: 8 f32 / 16 bf16 / 32 int8

    (w1v, b1v, w2v, b2v, w1c, b1c, w2c, b2c) = params

    # ---- fuse head parameters once, outside the kernel ----
    w1 = jnp.concatenate([w1v, w1c], axis=1).astype(dtype)          # [D, 2D]
    b1 = jnp.concatenate([b1v, b1c], axis=1).astype(jnp.float32)    # [1, 2D]
    zeros = jnp.zeros((D, 2), jnp.float32)
    w2 = jnp.concatenate(
        [jnp.concatenate([w2v.astype(jnp.float32), zeros], axis=1),
         jnp.concatenate([zeros, w2c.astype(jnp.float32)], axis=1)],
        axis=0)                                                      # [2D, 4]
    b2 = jnp.concatenate([b2v, b2c], axis=1).astype(jnp.float32)    # [1, 4]

    # ---- generation-aware row tile selection (no padding of x) ----
    vmem_cap = _vmem_capacity_bytes()
    small_vmem = vmem_cap <= (96 << 20)            # v7x-like: 64 MiB/TC, fast HBM
    if tm is None:
        tm = 8192 if small_vmem else (4096 if itemsize <= 2 else 2048)
    tm_eff = int(tm)
    # keep >= ~8 blocks so megacore sharding / pipelining stays busy, floor 512
    while tm_eff > 512 and pl.cdiv(N, tm_eff) < 8:
        tm_eff //= 2
    tm_eff = max(pack, _round_up(min(tm_eff, _round_up(N, pack)), pack))
    grid = pl.cdiv(N, tm_eff)                      # ragged tail masked by Pallas

    # ---- roofline hints ----
    flops = 2 * N * D * (2 * D) + 2 * N * (2 * D) * 4
    weight_hbm_bytes = (w1.size * w1.dtype.itemsize
                        + 4 * (b1.size + w2.size + b2.size))
    bytes_accessed = N * D * itemsize + N * 4 * itemsize + weight_hbm_bytes

    # ---- lane-padding-aware VMEM estimate, per-chip cap ----
    x_tile_b = tm_eff * _round_up(D, _LANE) * itemsize       # 64 lanes -> 128
    out_tile_b = tm_eff * _LANE * itemsize                    # 4 lanes  -> 128
    w1_b = _round_up(D, pack) * _round_up(2 * D, _LANE) * itemsize
    b1_b = 8 * _round_up(2 * D, _LANE) * 4
    w2_b = _round_up(2 * D, 8) * _LANE * 4
    b2_b = 8 * _LANE * 4
    needed = (2 * (x_tile_b + out_tile_b)                      # double-buffered I/O
              + 2 * (w1_b + b1_b + w2_b + b2_b)                # resident weights
              + (2 << 20))                                     # headroom
    vmem_limit = int(min(vmem_cap * 3 // 4, max(needed, 8 << 20)))

    rowtile = lambda i: (i, 0)     # row-tiled input / output
    resident = lambda i: (0, 0)    # weights/biases: same block every step

    out = pl.pallas_call(
        _fused_heads_kernel,
        out_shape=jax.ShapeDtypeStruct((N, 4), dtype),
        grid_spec=pltpu.PrefetchScalarGridSpec(
            num_scalar_prefetch=0,
            grid=(grid,),
            in_specs=[
                pl.BlockSpec((tm_eff, D), rowtile),    # x
                pl.BlockSpec((D, 2 * D), resident),    # fused W1
                pl.BlockSpec((1, 2 * D), resident),    # fused b1
                pl.BlockSpec((2 * D, 4), resident),    # block-diag W2
                pl.BlockSpec((1, 4), resident),        # fused b2
            ],
            out_specs=pl.BlockSpec((tm_eff, 4), rowtile),
        ),
        compiler_params=pltpu.CompilerParams(
            dimension_semantics=("parallel",),
            vmem_limit_bytes=vmem_limit),
        cost_estimate=pl.CostEstimate(flops=flops, transcendentals=0,
                                      bytes_accessed=bytes_accessed),
    )(x, w1, b1, w2, b2)

    vel = out[:, 0:2].reshape(B, T, 2)
    cov = out[:, 2:4].reshape(B, T, 2)
    return vel, cov


def init_params(key, hidden_dim):
    """Deterministic init mirroring nn.Linear shapes.

    Weights stored transposed relative to PyTorch (in_features, out_features)
    so the kernel does plain x @ W.  cov_head final bias is constant 0.0
    (matching nn.init.constant_).
    """
    ks = jax.random.split(key, 4)
    D = hidden_dim

    def lin(k, fan_in, fan_out):
        bound = 1.0 / jnp.sqrt(fan_in)
        kw, kb = jax.random.split(k)
        w = jax.random.uniform(kw, (fan_in, fan_out), jnp.float32, -bound, bound)
        b = jax.random.uniform(kb, (1, fan_out), jnp.float32, -bound, bound)
        return w, b

    w1v, b1v = lin(ks[0], D, D)
    w2v, b2v = lin(ks[1], D, 2)
    w1c, b1c = lin(ks[2], D, D)
    w2c, _ = lin(ks[3], D, 2)
    b2c = jnp.zeros((1, 2), jnp.float32)   # nn.init.constant_(cov_head[-1].bias, 0.0)
    return (w1v, b1v, w2v, b2v, w1c, b1c, w2c, b2c)


def _reference(h, params):
    (w1v, b1v, w2v, b2v, w1c, b1c, w2c, b2c) = params
    hv = jnp.maximum(h @ w1v + b1v[0], 0.0)
    vel = hv @ w2v + b2v[0]
    hc = jnp.maximum(h @ w1c + b1c[0], 0.0)
    cov = hc @ w2c + b2c[0]
    return vel, cov


if __name__ == "__main__":
    B, T, D = 2, 8, 64   # module default hidden_dim=64
    key = jax.random.PRNGKey(0)
    k_h, k_p, k_r = jax.random.split(key, 3)
    h = jax.random.normal(k_h, (B, T, D), jnp.float32)
    params = init_params(k_p, D)

    # f32 path
    vel, cov = output_heads(h, params)
    jax.block_until_ready((vel, cov))
    vel_ref, cov_ref = _reference(h, params)
    assert vel.shape == (B, T, 2) and cov.shape == (B, T, 2)
    assert jnp.allclose(vel, vel_ref, atol=5e-5, rtol=5e-5), \
        float(jnp.max(jnp.abs(vel - vel_ref)))
    assert jnp.allclose(cov, cov_ref, atol=5e-5, rtol=5e-5), \
        float(jnp.max(jnp.abs(cov - cov_ref)))

    # ragged row count (N = 15) exercises the cdiv grid / masked tail (no pad)
    h_r = jax.random.normal(k_r, (3, 5, D), jnp.float32)
    vel_r, cov_r = output_heads(h_r, params)
    jax.block_until_ready((vel_r, cov_r))
    vel_rr, cov_rr = _reference(h_r, params)
    assert jnp.allclose(vel_r, vel_rr, atol=5e-5, rtol=5e-5)
    assert jnp.allclose(cov_r, cov_rr, atol=5e-5, rtol=5e-5)

    # bf16 activations: halves the dominant HBM read; epilogue stays f32
    vel_b, cov_b = output_heads(h.astype(jnp.bfloat16), params)
    jax.block_until_ready((vel_b, cov_b))
    assert jnp.allclose(vel_b.astype(jnp.float32), vel_ref, atol=1e-1, rtol=5e-2)
    assert jnp.allclose(cov_b.astype(jnp.float32), cov_ref, atol=1e-1, rtol=5e-2)

    print("KERNEL_OK")
</pallas_src>

<mosaic_0001>
module attributes {stable_mosaic.version = 11 : i64} {
  func.func @_fused_heads_kernel(%arg0: i32, %arg1: memref<16x64xf32, #tpu.memory_space<vmem>>, %arg2: memref<64x128xf32, #tpu.memory_space<vmem>>, %arg3: memref<1x128xf32, #tpu.memory_space<vmem>>, %arg4: memref<128x4xf32, #tpu.memory_space<vmem>>, %arg5: memref<1x4xf32, #tpu.memory_space<vmem>>, %arg6: memref<16x4xf32, #tpu.memory_space<vmem>>) attributes {dimension_semantics = [#tpu.dimension_semantics<parallel>], iteration_bounds = array<i64: 1>, scalar_prefetch = 0 : i64, scratch_operands = 0 : i64, tpu.core_type = #tpu.core_type<tc>, window_params = [{transform_indices = @transform_0, window_bounds = array<i64: 16, 64>}, {pipeline_mode = #tpu.pipeline_mode<synchronous>, transform_indices = @transform_1, window_bounds = array<i64: 64, 128>}, {pipeline_mode = #tpu.pipeline_mode<synchronous>, transform_indices = @transform_2, window_bounds = array<i64: 1, 128>}, {pipeline_mode = #tpu.pipeline_mode<synchronous>, transform_indices = @transform_3, window_bounds = array<i64: 128, 4>}, {pipeline_mode = #tpu.pipeline_mode<synchronous>, transform_indices = @transform_4, window_bounds = array<i64: 1, 4>}, {transform_indices = @transform_5, window_bounds = array<i64: 16, 4>}]} {
    %c0 = arith.constant 0 : index
    %c0_0 = arith.constant 0 : index
    %0 = vector.load %arg1[%c0, %c0_0] : memref<16x64xf32, #tpu.memory_space<vmem>>, vector<16x64xf32>
    %c0_1 = arith.constant 0 : index
    %c0_2 = arith.constant 0 : index
    %1 = vector.load %arg2[%c0_1, %c0_2] : memref<64x128xf32, #tpu.memory_space<vmem>>, vector<64x128xf32>
    %cst = arith.constant dense<0.000000e+00> : vector<16x128xf32>
    %2 = tpu.matmul %0, %1, %cst {dimension_numbers = #tpu.dot_dimension_numbers<[1], [0], [0], [1], [0, 0, 1, 1], [], []>} : vector<16x64xf32>, vector<64x128xf32>, vector<16x128xf32> -> vector<16x128xf32>
    %c0_3 = arith.constant 0 : index
    %c0_4 = arith.constant 0 : index
    %3 = vector.load %arg3[%c0_3, %c0_4] : memref<1x128xf32, #tpu.memory_space<vmem>>, vector<1x128xf32>
    %4 = vector.broadcast %3 : vector<1x128xf32> to vector<16x128xf32>
    %5 = arith.addf %2, %4 : vector<16x128xf32>
    %cst_5 = arith.constant 0.000000e+00 : f32
    %6 = vector.broadcast %cst_5 : f32 to vector<16x128xf32>
    %7 = arith.maximumf %5, %6 : vector<16x128xf32>
    %c0_6 = arith.constant 0 : index
    %c0_7 = arith.constant 0 : index
    %8 = vector.load %arg4[%c0_6, %c0_7] : memref<128x4xf32, #tpu.memory_space<vmem>>, vector<128x4xf32>
    %cst_8 = arith.constant dense<0.000000e+00> : vector<16x4xf32>
    %9 = tpu.matmul %7, %8, %cst_8 {dimension_numbers = #tpu.dot_dimension_numbers<[1], [0], [0], [1], [0, 0, 1, 1], [], []>} : vector<16x128xf32>, vector<128x4xf32>, vector<16x4xf32> -> vector<16x4xf32>
    %c0_9 = arith.constant 0 : index
    %c0_10 = arith.constant 0 : index
    %10 = vector.load %arg5[%c0_9, %c0_10] : memref<1x4xf32, #tpu.memory_space<vmem>>, vector<1x4xf32>
    %11 = vector.broadcast %10 : vector<1x4xf32> to vector<16x4xf32>
    %12 = arith.addf %9, %11 : vector<16x4xf32>
    %c0_11 = arith.constant 0 : index
    %c0_12 = arith.constant 0 : index
    %13 = vector.load %arg6[%c0_11, %c0_12] : memref<16x4xf32, #tpu.memory_space<vmem>>, vector<16x4xf32>
    tpu.vector_store %arg6[%c0_11, %c0_12], %12 {strides = array<i32>} : memref<16x4xf32, #tpu.memory_space<vmem>>, vector<16x4xf32>,
    return
  }
  func.func @transform_0(%arg0: i32) -> (i32, i32) {
    %c0_i32 = arith.constant 0 : i32
    %c0_i32_0 = arith.constant 0 : i32
    return %arg0, %c0_i32 : i32, i32
  }
  func.func @transform_1(%arg0: i32) -> (i32, i32) {
    %c0_i32 = arith.constant 0 : i32
    %c0_i32_0 = arith.constant 0 : i32
    %c0_i32_1 = arith.constant 0 : i32
    return %c0_i32, %c0_i32_0 : i32, i32
  }
  func.func @transform_2(%arg0: i32) -> (i32, i32) {
    %c0_i32 = arith.constant 0 : i32
    %c0_i32_0 = arith.constant 0 : i32
    %c0_i32_1 = arith.constant 0 : i32
    return %c0_i32, %c0_i32_0 : i32, i32
  }
  func.func @transform_3(%arg0: i32) -> (i32, i32) {
    %c0_i32 = arith.constant 0 : i32
    %c0_i32_0 = arith.constant 0 : i32
    %c0_i32_1 = arith.constant 0 : i32
    return %c0_i32, %c0_i32_0 : i32, i32
  }
  func.func @transform_4(%arg0: i32) -> (i32, i32) {
    %c0_i32 = arith.constant 0 : i32
    %c0_i32_0 = arith.constant 0 : i32
    %c0_i32_1 = arith.constant 0 : i32
    return %c0_i32, %c0_i32_0 : i32, i32
  }
  func.func @transform_5(%arg0: i32) -> (i32, i32) {
    %c0_i32 = arith.constant 0 : i32
    %c0_i32_0 = arith.constant 0 : i32
    return %arg0, %c0_i32 : i32, i32
  }
}

</mosaic_0001>

<llo_original>
// kernel: output_heads.1
$region0: #{output_heads.1}
  #allocation0 [shape = 'u32[]', space=smem, size = 0x4, offset = 0x4, fixed_abs, tag = 'smem constant byte address 0x4 - core index']
  #allocation1 [shape = 'u32[144,128]{1,0:T(1,128)}', space=vmem, size = 0x12000, scoped, tag = 'internal scratch']
  %s0 = inlined_call_operand.vmem [shape: f32[16,64], index: 0, kind: input, shape index: {}]
  %s1 = inlined_call_operand.vmem [shape: f32[64,128], index: 1, kind: input, shape index: {}]
  %s2 = inlined_call_operand.vmem [shape: f32[1,128], index: 2, kind: input, shape index: {}]
  %s3 = inlined_call_operand.vmem [shape: f32[128,4], index: 3, kind: input, shape index: {}]
  %s4 = inlined_call_operand.vmem [shape: f32[1,4], index: 4, kind: input, shape index: {}]
  %s5 = inlined_call_operand.vmem [shape: f32[16,4], index: 5, kind: output, shape index: {}]
  %s6 = sld [smem:[#allocation0]]
  $region30: #{output_heads.1} parent=0
    _
  %s8 = ssub.s32 1, %s6
  %s9 = scalar_select 0, %s8, %s6
  // Predicated region
  $region2: #{output_heads.1} parent=0 // pred_check
    _
  $region3: #{output_heads.1} parent=0 // pred_check_branch
    %11 = sbr.rel (0) target = $region5
  $region4: #{output_heads.1} parent=0 // pred_region
    _
  $region5: #{output_heads.1} parent=0 // pred_fallthru
    _
  // Predicated region
  $region6: #{output_heads.1} parent=0 // pred_check
    _
  $region7: #{output_heads.1} parent=0 // pred_check_branch
    %13 = sbr.rel (0) target = $region9
  $region8: #{output_heads.1} parent=0 // pred_region
    _
  $region9: #{output_heads.1} parent=0 // pred_fallthru
    _
  // Predicated region
  $region10: #{output_heads.1} parent=0 // pred_check
    _
  $region11: #{output_heads.1} parent=0 // pred_check_branch
    %15 = sbr.rel (0) target = $region13
  $region12: #{output_heads.1} parent=0 // pred_region
    _
  $region13: #{output_heads.1} parent=0 // pred_fallthru
    _
  // Predicated region
  $region14: #{output_heads.1} parent=0 // pred_check
    _
  $region15: #{output_heads.1} parent=0 // pred_check_branch
    %17 = sbr.rel (0) target = $region17
  $region16: #{output_heads.1} parent=0 // pred_region
    _
  $region17: #{output_heads.1} parent=0 // pred_fallthru
    _
  // Predicated region
  $region18: #{output_heads.1} parent=0 // pred_check
    _
  $region19: #{output_heads.1} parent=0 // pred_check_branch
    %19 = sbr.rel (0) target = $region21
  $region20: #{output_heads.1} parent=0 // pred_region
    _
  $region21: #{output_heads.1} parent=0 // pred_fallthru
    _
  %v20 = vld [vmem:[%s0] sm:$0xff]
  %v21 = vld [vmem:[%s0 + $0x8] sm:$0xff]
  %v22 = vld [vmem:[%s1] sm:$0xff]
  %v23 = vld [vmem:[%s1 + $0x8] sm:$0xff]
  %v24 = vld [vmem:[%s1 + $0x10] sm:$0xff]
  %v25 = vld [vmem:[%s1 + $0x18] sm:$0xff]
  %v26 = vld [vmem:[%s1 + $0x20] sm:$0xff]
  %v27 = vld [vmem:[%s1 + $0x28] sm:$0xff]
  %v28 = vld [vmem:[%s1 + $0x30] sm:$0xff]
  %v29 = vld [vmem:[%s1 + $0x38] sm:$0xff]
  %v30 = vld [vmem:[%s2] sm:$0x1]
  %v32 = vlaneseq
  %v33 = vshrl.u32 %v32, 7
  %v34 = vsub.s32 0, %v33
  %v35 = vrot.slane %v30, %v34
  %vm37 = vcmask 523264
  %v39 = vsel %vm37, %v20, 0
  %v42 = vsel %vm37, %v21, 0
  %44 = vmatprep.subr.mxu0 0.0
  %45 = vmatpush1.msra.mxu0 0.0
  %46 = vmatprep.subr.mxu0 0.0
  %47 = vmatpush1.msra.mxu0 0.0
  %48 = vmatprep.subr.mxu0 0.0
  %49 = vmatpush1.msra.mxu0 0.0
  %50 = vmatprep.subr.mxu0 0.0
  %51 = vmatpush1.msra.mxu0 0.0
  %52 = vmatprep.subr.mxu0 0.0
  %53 = vmatpush1.msra.mxu0 0.0
  %54 = vmatprep.subr.mxu0 0.0
  %55 = vmatpush1.msra.mxu0 0.0
  %56 = vmatprep.subr.mxu0 0.0
  %57 = vmatpush1.msra.mxu0 0.0
  %58 = vmatprep.subr.mxu0 0.0
  %59 = vmatpush1.msra.mxu0 0.0
  %60 = vmatprep.subr.mxu0 0.0
  %61 = vmatpush1.msra.mxu0 %v29
  %62 = vmatprep.subr.mxu0 0.0
  %63 = vmatpush1.msra.mxu0 %v28
  %64 = vmatprep.subr.mxu0 0.0
  %65 = vmatpush1.msra.mxu0 %v27
  %66 = vmatprep.subr.mxu0 0.0
  %67 = vmatpush1.msra.mxu0 %v26
  %68 = vmatprep.subr.mxu0 0.0
  %69 = vmatpush1.msra.mxu0 %v25
  %70 = vmatprep.subr.mxu0 0.0
  %71 = vmatpush1.msra.mxu0 %v24
  %72 = vmatprep.subr.mxu0 0.0
  %73 = vmatpush1.msra.mxu0 %v23
  %74 = vmatprep.subr.mxu0 0.0
  %75 = vmatpush1.msra.mxu0 %v22
  %76 = vmatprep.subr.mxu0 0.0
  %77 = vmatpush2.msra.mxu0 0.0
  %78 = vmatprep.subr.mxu0 0.0
  %79 = vmatpush2.msra.mxu0 0.0
  %80 = vmatprep.subr.mxu0 0.0
  %81 = vmatpush2.msra.mxu0 0.0
  %82 = vmatprep.subr.mxu0 0.0
  %83 = vmatpush2.msra.mxu0 0.0
  %84 = vmatprep.subr.mxu0 0.0
  %85 = vmatpush2.msra.mxu0 0.0
  %86 = vmatprep.subr.mxu0 0.0
  %87 = vmatpush2.msra.mxu0 0.0
  %88 = vmatprep.subr.mxu0 0.0
  %89 = vmatpush2.msra.mxu0 0.0
  %90 = vmatprep.subr.mxu0 0.0
  %91 = vmatpush2.msra.mxu0 0.0
  %92 = vmatprep.subr.mxu0 0.0
  %93 = vmatpush2.msra.mxu0 0.0
  %94 = vmatprep.subr.mxu0 0.0
  %95 = vmatpush2.msra.mxu0 0.0
  %96 = vmatprep.subr.mxu0 0.0
  %97 = vmatpush2.msra.mxu0 0.0
  %98 = vmatprep.subr.mxu0 0.0
  %99 = vmatpush2.msra.mxu0 0.0
  %100 = vmatprep.subr.mxu0 0.0
  %101 = vmatpush2.msra.mxu0 0.0
  %102 = vmatprep.subr.mxu0 0.0
  %103 = vmatpush2.msra.mxu0 0.0
  %104 = vmatprep.subr.mxu0 0.0
  %105 = vmatpush2.msra.mxu0 0.0
  %106 = vmatprep.subr.mxu0 0.0
  %107 = vmatpush2.msra.mxu0 0.0
  %108 = vmatprep.mubr.f32.mxu0 0.0
  %109 = vmatmul.mubr.f32.gmra.mxu0 %v39
  %v110 = vpop.f32.mrf.mxu0
  %v111 = vadd.f32 %v35, %v110
  %v112 = vpop.f32.mrf.mxu0
  %113 = vmatprep.mubr.f32.mxu0 0.0
  %114 = vmatmul.mubr.f32.gmra.mxu0 %v42
  %v115 = vpop.f32.mrf.mxu0
  %v116 = vadd.f32 %v35, %v115
  %v117 = vpop.f32.mrf.mxu0
  %118 = vdwg.mxu0
  %v119 = vmax.f32 %v111, 0.0
  %v120 = vmax.f32 %v116, 0.0
  %v121 = vld [vmem:[%s3] sm:$0xff]
  %v122 = vld [vmem:[%s3 + $0x8] sm:$0xff]
  %v123 = vld [vmem:[%s3 + $0x10] sm:$0xff]
  %v124 = vld [vmem:[%s3 + $0x18] sm:$0xff]
  %v125 = vld [vmem:[%s3 + $0x20] sm:$0xff]
  %v126 = vld [vmem:[%s3 + $0x28] sm:$0xff]
  %v127 = vld [vmem:[%s3 + $0x30] sm:$0xff]
  %v128 = vld [vmem:[%s3 + $0x38] sm:$0xff]
  %v129 = vld [vmem:[%s3 + $0x40] sm:$0xff]
  %v130 = vld [vmem:[%s3 + $0x48] sm:$0xff]
  %v131 = vld [vmem:[%s3 + $0x50] sm:$0xff]
  %v132 = vld [vmem:[%s3 + $0x58] sm:$0xff]
  %v133 = vld [vmem:[%s3 + $0x60] sm:$0xff]
  %v134 = vld [vmem:[%s3 + $0x68] sm:$0xff]
  %v135 = vld [vmem:[%s3 + $0x70] sm:$0xff]
  %v136 = vld [vmem:[%s3 + $0x78] sm:$0xff]
  %v137 = vld [vmem:[%s4] sm:$0x1]
  %v139 = vlaneseq
  %v140 = vshrl.u32 %v139, 7
  %v141 = vsub.s32 0, %v140
  %v142 = vrot.slane %v137, %v141
  %144 = vmatprep.subr.mxu0 0.0
  %145 = vmatpush1.msra.mxu0 %v136
  %146 = vmatprep.subr.mxu0 0.0
  %147 = vmatpush1.msra.mxu0 %v135
  %148 = vmatprep.subr.mxu0 0.0
  %149 = vmatpush1.msra.mxu0 %v134
  %150 = vmatprep.subr.mxu0 0.0
  %151 = vmatpush1.msra.mxu0 %v133
  %152 = vmatprep.subr.mxu0 0.0
  %153 = vmatpush1.msra.mxu0 %v132
  %154 = vmatprep.subr.mxu0 0.0
  %155 = vmatpush1.msra.mxu0 %v131
  %156 = vmatprep.subr.mxu0 0.0
  %157 = vmatpush1.msra.mxu0 %v130
  %158 = vmatprep.subr.mxu0 0.0
  %159 = vmatpush1.msra.mxu0 %v129
  %160 = vmatprep.subr.mxu0 0.0
  %161 = vmatpush1.msra.mxu0 %v128
  %162 = vmatprep.subr.mxu0 0.0
  %163 = vmatpush1.msra.mxu0 %v127
  %164 = vmatprep.subr.mxu0 0.0
  %165 = vmatpush1.msra.mxu0 %v126
  %166 = vmatprep.subr.mxu0 0.0
  %167 = vmatpush1.msra.mxu0 %v125
  %168 = vmatprep.subr.mxu0 0.0
  %169 = vmatpush1.msra.mxu0 %v124
  %170 = vmatprep.subr.mxu0 0.0
  %171 = vmatpush1.msra.mxu0 %v123
  %172 = vmatprep.subr.mxu0 0.0
  %173 = vmatpush1.msra.mxu0 %v122
  %174 = vmatprep.subr.mxu0 0.0
  %175 = vmatpush1.msra.mxu0 %v121
  %176 = vmatprep.subr.mxu0 0.0
  %177 = vmatpush2.msra.mxu0 0.0
  %178 = vmatprep.subr.mxu0 0.0
  %179 = vmatpush2.msra.mxu0 0.0
  %180 = vmatprep.subr.mxu0 0.0
  %181 = vmatpush2.msra.mxu0 0.0
  %182 = vmatprep.subr.mxu0 0.0
  %183 = vmatpush2.msra.mxu0 0.0
  %184 = vmatprep.subr.mxu0 0.0
  %185 = vmatpush2.msra.mxu0 0.0
  %186 = vmatprep.subr.mxu0 0.0
  %187 = vmatpush2.msra.mxu0 0.0
  %188 = vmatprep.subr.mxu0 0.0
  %189 = vmatpush2.msra.mxu0 0.0
  %190 = vmatprep.subr.mxu0 0.0
  %191 = vmatpush2.msra.mxu0 0.0
  %192 = vmatprep.subr.mxu0 0.0
  %193 = vmatpush2.msra.mxu0 0.0
  %194 = vmatprep.subr.mxu0 0.0
  %195 = vmatpush2.msra.mxu0 0.0
  %196 = vmatprep.subr.mxu0 0.0
  %197 = vmatpush2.msra.mxu0 0.0
  %198 = vmatprep.subr.mxu0 0.0
  %199 = vmatpush2.msra.mxu0 0.0
  %200 = vmatprep.subr.mxu0 0.0
  %201 = vmatpush2.msra.mxu0 0.0
  %202 = vmatprep.subr.mxu0 0.0
  %203 = vmatpush2.msra.mxu0 0.0
  %204 = vmatprep.subr.mxu0 0.0
  %205 = vmatpush2.msra.mxu0 0.0
  %206 = vmatprep.subr.mxu0 0.0
  %207 = vmatpush2.msra.mxu0 0.0
  %208 = vmatprep.mubr.f32.mxu0 0.0
  %209 = vmatmul.mubr.f32.gmra.mxu0 %v119
  %v210 = vpop.f32.mrf.mxu0
  %v211 = vadd.f32 %v142, %v210
  %v212 = vpop.f32.mrf.mxu0
  %213 = vmatprep.mubr.f32.mxu0 0.0
  %214 = vmatmul.mubr.f32.gmra.mxu0 %v120
  %v215 = vpop.f32.mrf.mxu0
  %v216 = vadd.f32 %v142, %v215
  %v217 = vpop.f32.mrf.mxu0
  %218 = vdwg.mxu0
  %vm219 = vcmask 31744
  %220 = vst.msk [vmem:[%s5] sm:$0xff] %vm219, %v211
  %221 = vst.msk [vmem:[%s5 + $0x8] sm:$0xff] %vm219, %v216
  // Predicated region
  $region22: #{output_heads.1} parent=0 // pred_check
    _
  $region23: #{output_heads.1} parent=0 // pred_check_branch
    %223 = sbr.rel (0) target = $region25
  $region24: #{output_heads.1} parent=0 // pred_region
    _
  $region25: #{output_heads.1} parent=0 // pred_fallthru
    _
  // Predicated region
  $region26: #{output_heads.1} parent=0 // pred_check
    _
  $region27: #{output_heads.1} parent=0 // pred_check_branch
    %225 = sbr.rel (0) target = $region29
  $region28: #{output_heads.1} parent=0 // pred_region
    _
  $region29: #{output_heads.1} parent=0 // pred_fallthru
    _

</llo_original>
